<compile_context>
chip_gen: v5e
topology: v5e:2x2
jax: 0.10.0
libtpu: 0.0.40
codegen_flags: <defaults>
</compile_context>

<pallas_src>
import numpy as np

import jax
import jax.numpy as jnp
from jax.experimental import pallas as pl
from jax.experimental.pallas import tpu as pltpu


def _cdiv(a, b):
    return (a + b - 1) // b


# ----------------------------------------------------------------------------
# Kernel: one propagation layer  E_out = G @ E_in  (block-sparse, tiled).
#   counts_ref : SMEM (nb,)        #non-zero column blocks for each row block
#   colids_ref : SMEM (nb * kmax,) flattened non-zero column-block ids (padded
#                                  by repeating the last valid id)
#   g_ref      : VMEM (t, t)   bf16  current G tile
#   e_ref      : VMEM (t, Dp)  bf16  current E tile (rows = G tile columns)
#   out_ref    : VMEM (t, Dp)  f32   output row block, resident across K axis
# ----------------------------------------------------------------------------
def _propagate_layer_kernel(counts_ref, colids_ref, g_ref, e_ref, out_ref):
    ri = pl.program_id(0)
    k = pl.program_id(1)

    @pl.when(k == 0)
    def _init():
        out_ref[...] = jnp.zeros_like(out_ref)

    # Skip padded steps (k beyond this row block's non-zero block count).
    @pl.when(k < counts_ref[ri])
    def _accumulate():
        out_ref[...] += jnp.dot(
            g_ref[...], e_ref[...], preferred_element_type=jnp.float32
        )


def _make_propagate(n_pad, d_pad, tile_n, kmax):
    nb = n_pad // tile_n

    def g_map(ri, k, counts_ref, colids_ref):
        return (ri, colids_ref[ri * kmax + k])

    def e_map(ri, k, counts_ref, colids_ref):
        return (colids_ref[ri * kmax + k], 0)

    def o_map(ri, k, counts_ref, colids_ref):
        return (ri, 0)

    return pl.pallas_call(
        _propagate_layer_kernel,
        out_shape=jax.ShapeDtypeStruct((n_pad, d_pad), jnp.float32),
        grid_spec=pltpu.PrefetchScalarGridSpec(
            num_scalar_prefetch=2,
            grid=(nb, kmax),
            in_specs=[
                pl.BlockSpec((tile_n, tile_n), g_map),   # G tile (streamed)
                pl.BlockSpec((tile_n, d_pad), e_map),    # E tile
            ],
            out_specs=pl.BlockSpec((tile_n, d_pad), o_map),
        ),
        compiler_params=pltpu.CompilerParams(
            dimension_semantics=("parallel", "arbitrary"),
            # Explicit scoped-VMEM budget: above v5e/v6e defaults, below
            # v7x's 64 MiB physical ceiling.
            vmem_limit_bytes=48 * 1024 * 1024,
        ),
    )


def _block_sparsity_metadata(g_np, tile_n):
    """Per row-block list of non-zero column blocks (host-side; graph is static)."""
    n_pad = g_np.shape[0]
    nb = n_pad // tile_n
    blk_nnz = np.abs(g_np).reshape(nb, tile_n, nb, tile_n).sum(axis=(1, 3)) > 0
    counts = blk_nnz.sum(axis=1).astype(np.int32)
    kmax = int(max(1, counts.max()))
    colids = np.zeros((nb, kmax), dtype=np.int32)
    for ri in range(nb):
        ids = np.nonzero(blk_nnz[ri])[0].astype(np.int32)
        if ids.size == 0:
            ids = np.zeros((1,), dtype=np.int32)
        pad = np.full((kmax - ids.size,), ids[-1], dtype=np.int32)
        colids[ri] = np.concatenate([ids, pad])[:kmax]
    return jnp.asarray(counts), jnp.asarray(colids.reshape(-1)), kmax


def lightgcn_aggregate(graph, emb_u, emb_i, n_layer, *, tile_n=128):
    """Returns (xu_all, xi_all) exactly like LightGCN.aggregate() (eval mode)."""
    n_user, d = emb_u.shape
    n_item = emb_i.shape[0]
    n = n_user + n_item
    n_pad = tile_n * _cdiv(n, tile_n)
    d_pad = 128 * _cdiv(d, 128)          # lane-dense output / full MXU columns

    # Densified + zero-padded normalized adjacency.
    # TODO(synk): the torch module consumes a torch.sparse graph; here block
    # structure is extracted host-side and only non-zero (tile_n, tile_n)
    # blocks are ever streamed or multiplied on the MXU.
    g_np = np.zeros((n_pad, n_pad), dtype=np.float32)
    g_np[:n, :n] = np.asarray(jax.device_get(graph), dtype=np.float32)
    counts, colids_flat, kmax = _block_sparsity_metadata(g_np, tile_n)
    g_bf16 = jnp.asarray(g_np).astype(jnp.bfloat16)

    # Layer-0 embeddings, zero-padded to (n_pad, d_pad).
    e0 = jnp.zeros((n_pad, d_pad), jnp.float32)
    e0 = e0.at[:n_user, :d].set(emb_u.astype(jnp.float32))
    e0 = e0.at[n_user:n, :d].set(emb_i.astype(jnp.float32))

    propagate = _make_propagate(n_pad, d_pad, tile_n, kmax)

    e = e0
    acc = e0
    for _ in range(n_layer):
        e = propagate(counts, colids_flat, g_bf16, e.astype(jnp.bfloat16))
        acc = acc + e                      # layer-mean accumulation (tiny, JAX)
    x_out = (acc * (1.0 / float(n_layer + 1)))[:n, :d]
    return x_out[:n_user], x_out[n_user:]


def lightgcn_forward(graph, emb_u, emb_i, n_layer, idx_u, idx_i, *, tile_n=128):
    xu_all, xi_all = lightgcn_aggregate(graph, emb_u, emb_i, n_layer,
                                        tile_n=tile_n)
    # Gather + per-pair dot in plain JAX: at batch=8 the per-pallas_call
    # overhead exceeds the work and a (B, 1) output would be lane-sparse.
    u = xu_all[idx_u]
    it = xi_all[idx_i]
    return jnp.sum(u * it, axis=1)


# ----------------------------------------------------------------------------
# Pure-JAX f32 reference (mirrors the PyTorch forward, eval mode / no dropout).
# ----------------------------------------------------------------------------
def reference_forward(graph, emb_u, emb_i, n_layer, idx_u, idx_i):
    all_emb = jnp.concatenate([emb_u, emb_i], axis=0)
    xs = [all_emb]
    e = all_emb
    for _ in range(n_layer):
        e = graph @ e
        xs.append(e)
    x_out = jnp.mean(jnp.stack(xs, axis=1), axis=1)
    n_user = emb_u.shape[0]
    xu_all, xi_all = x_out[:n_user], x_out[n_user:]
    return jnp.sum(xu_all[idx_u] * xi_all[idx_i], axis=1)


if __name__ == "__main__":
    # Small, deterministic problem sizes.
    n_user, n_item, d_latent, n_layer, batch = 64, 96, 32, 3, 8
    N = n_user + n_item

    key = jax.random.PRNGKey(0)
    k_u, k_i, k_r, k_iu, k_ii = jax.random.split(key, 5)

    # Embedding tables (init_normal path: std=0.1), float32.
    emb_u = 0.1 * jax.random.normal(k_u, (n_user, d_latent), dtype=jnp.float32)
    emb_i = 0.1 * jax.random.normal(k_i, (n_item, d_latent), dtype=jnp.float32)

    # Synthetic bipartite interaction matrix -> symmetric normalized adjacency.
    R = (jax.random.uniform(k_r, (n_user, n_item)) < 0.05).astype(jnp.float32)
    A = jnp.zeros((N, N), dtype=jnp.float32)
    A = A.at[:n_user, n_user:].set(R)
    A = A.at[n_user:, :n_user].set(R.T)
    deg = jnp.sum(A, axis=1)
    d_inv_sqrt = jnp.where(deg > 0, 1.0 / jnp.sqrt(jnp.maximum(deg, 1e-12)), 0.0)
    graph = A * d_inv_sqrt[:, None] * d_inv_sqrt[None, :]

    idx_u = jax.random.randint(k_iu, (batch,), 0, n_user)
    idx_i = jax.random.randint(k_ii, (batch,), 0, n_item)

    # tile_n=128 on the toy graph gives a 2x2 block grid and exercises the
    # block-sparse skip path (row block 1 only touches column block 0).
    out = lightgcn_forward(graph, emb_u, emb_i, n_layer, idx_u, idx_i,
                           tile_n=128)
    out = jax.block_until_ready(out)

    ref = reference_forward(graph, emb_u, emb_i, n_layer, idx_u, idx_i)
    assert out.shape == (batch,)
    # Tolerance sized for bf16 graph/activation streaming with f32 accumulation.
    assert jnp.allclose(out, ref, rtol=3e-2, atol=3e-3), (out, ref)

    print("KERNEL_OK")
</pallas_src>

<mosaic_0001>
module attributes {stable_mosaic.version = 11 : i64} {
  func.func @_propagate_layer_kernel(%arg0: i32, %arg1: i32, %arg2: memref<2xi32, #tpu.memory_space<smem>>, %arg3: memref<4xi32, #tpu.memory_space<smem>>, %arg4: memref<128x128xbf16, #tpu.memory_space<vmem>>, %arg5: memref<128x128xbf16, #tpu.memory_space<vmem>>, %arg6: memref<128x128xf32, #tpu.memory_space<vmem>>) attributes {dimension_semantics = [#tpu.dimension_semantics<parallel>, #tpu.dimension_semantics<arbitrary>], iteration_bounds = array<i64: 2, 2>, scalar_prefetch = 2 : i64, scratch_operands = 0 : i64, tpu.core_type = #tpu.core_type<tc>, window_params = [{transform_indices = @transform_0, window_bounds = array<i64: 128, 128>}, {transform_indices = @transform_1, window_bounds = array<i64: 128, 128>}, {transform_indices = @transform_2, window_bounds = array<i64: 128, 128>}]} {
    %c0_i32 = arith.constant 0 : i32
    %0 = arith.cmpi eq, %arg1, %c0_i32 : i32
    %1 = arith.extui %0 : i1 to i32
    %c0_i32_0 = arith.constant 0 : i32
    %2 = arith.cmpi ne, %1, %c0_i32_0 : i32
    scf.if %2 {
      %cst = arith.constant 0.000000e+00 : f32
      %8 = vector.broadcast %cst : f32 to vector<128x128xf32>
      %c0 = arith.constant 0 : index
      %c0_2 = arith.constant 0 : index
      %9 = vector.load %arg6[%c0, %c0_2] : memref<128x128xf32, #tpu.memory_space<vmem>>, vector<128x128xf32>
      tpu.vector_store %arg6[%c0, %c0_2], %8 {strides = array<i32>} : memref<128x128xf32, #tpu.memory_space<vmem>>, vector<128x128xf32>,
    } else {
    }
    %3 = arith.index_cast %arg0 : i32 to index
    %4 = memref.load %arg2[%3] : memref<2xi32, #tpu.memory_space<smem>>
    %5 = arith.cmpi slt, %arg1, %4 : i32
    %6 = arith.extui %5 : i1 to i32
    %c0_i32_1 = arith.constant 0 : i32
    %7 = arith.cmpi ne, %6, %c0_i32_1 : i32
    scf.if %7 {
      %c0 = arith.constant 0 : index
      %c0_2 = arith.constant 0 : index
      %8 = vector.load %arg6[%c0, %c0_2] : memref<128x128xf32, #tpu.memory_space<vmem>>, vector<128x128xf32>
      %c0_3 = arith.constant 0 : index
      %c0_4 = arith.constant 0 : index
      %9 = vector.load %arg4[%c0_3, %c0_4] : memref<128x128xbf16, #tpu.memory_space<vmem>>, vector<128x128xbf16>
      %c0_5 = arith.constant 0 : index
      %c0_6 = arith.constant 0 : index
      %10 = vector.load %arg5[%c0_5, %c0_6] : memref<128x128xbf16, #tpu.memory_space<vmem>>, vector<128x128xbf16>
      %cst = arith.constant dense<0.000000e+00> : vector<128x128xf32>
      %11 = tpu.matmul %9, %10, %cst {dimension_numbers = #tpu.dot_dimension_numbers<[1], [0], [0], [1], [0, 0, 1, 1], [], []>} : vector<128x128xbf16>, vector<128x128xbf16>, vector<128x128xf32> -> vector<128x128xf32>
      %12 = arith.addf %8, %11 : vector<128x128xf32>
      %c0_7 = arith.constant 0 : index
      %c0_8 = arith.constant 0 : index
      %13 = vector.load %arg6[%c0_7, %c0_8] : memref<128x128xf32, #tpu.memory_space<vmem>>, vector<128x128xf32>
      tpu.vector_store %arg6[%c0_7, %c0_8], %12 {strides = array<i32>} : memref<128x128xf32, #tpu.memory_space<vmem>>, vector<128x128xf32>,
    } else {
    }
    return
  }
  func.func @transform_0(%arg0: i32, %arg1: i32, %arg2: memref<2xi32, #tpu.memory_space<smem>>, %arg3: memref<4xi32, #tpu.memory_space<smem>>) -> (i32, i32) {
    %c2_i32 = arith.constant 2 : i32
    %0 = arith.muli %arg0, %c2_i32 : i32
    %1 = arith.addi %0, %arg1 : i32
    %2 = arith.index_cast %1 : i32 to index
    %3 = memref.load %arg3[%2] : memref<4xi32, #tpu.memory_space<smem>>
    %c0_i32 = arith.constant 0 : i32
    return %arg0, %3 : i32, i32
  }
  func.func @transform_1(%arg0: i32, %arg1: i32, %arg2: memref<2xi32, #tpu.memory_space<smem>>, %arg3: memref<4xi32, #tpu.memory_space<smem>>) -> (i32, i32) {
    %c2_i32 = arith.constant 2 : i32
    %0 = arith.muli %arg0, %c2_i32 : i32
    %1 = arith.addi %0, %arg1 : i32
    %2 = arith.index_cast %1 : i32 to index
    %3 = memref.load %arg3[%2] : memref<4xi32, #tpu.memory_space<smem>>
    %c0_i32 = arith.constant 0 : i32
    %c0_i32_0 = arith.constant 0 : i32
    return %3, %c0_i32 : i32, i32
  }
  func.func @transform_2(%arg0: i32, %arg1: i32, %arg2: memref<2xi32, #tpu.memory_space<smem>>, %arg3: memref<4xi32, #tpu.memory_space<smem>>) -> (i32, i32) {
    %c0_i32 = arith.constant 0 : i32
    %c0_i32_0 = arith.constant 0 : i32
    return %arg0, %c0_i32 : i32, i32
  }
}

</mosaic_0001>

<llo_original>
// kernel: tpu_custom_call.1
$region0: #{tpu_custom_call.1}
  #allocation0 [shape = 'u32[]', space=smem, size = 0x4, offset = 0x4, fixed_abs, tag = 'smem constant byte address 0x4 - core index']
  #allocation1 [shape = 'u32[72,128]{1,0:T(1,128)}', space=vmem, size = 0x9000, scoped, tag = 'internal scratch']
  #allocation2 [shape = 's32[1]{0}', space=sflag, size = 0x4, scoped, tag = 'scoped memory for tpu_custom_call.1']
  #allocation3 [shape = 'u8[512]{0}', space=smem, size = 0x200, scoped, tag = 'prefetched SMEM operand 0']
  #allocation4 [shape = 'u8[512]{0}', space=smem, size = 0x200, scoped, tag = 'prefetched SMEM operand 1']
  %s0 = inlined_call_operand.hbm [shape: s32[2], index: 0, kind: input, shape index: {}]
  %s1 = inlined_call_operand.hbm [shape: s32[4], index: 1, kind: input, shape index: {}]
  %s2 = inlined_call_operand.hbm [shape: bf16[256,256], index: 2, kind: input, shape index: {}]
  %s3 = inlined_call_operand.hbm [shape: bf16[256,128], index: 3, kind: input, shape index: {}]
  %s4 = inlined_call_operand.hbm [shape: f32[256,128], index: 4, kind: output, shape index: {}]
  %s5 = sld [smem:[#allocation0]]
  $region57: #{tpu_custom_call.1} parent=0
    _
  %s7 = ssub.s32 1, %s5
  %s8 = scalar_select 0, %s7, %s5
  %s10 = sshll.u32 %s0, 4
  %s11 = int_to_ptr.hbm [resolvable:$true] %s10
  %13 = dma.hbm_to_smem %s11, 16, [#allocation3], [#allocation2]
  %s15 = sshll.u32 %s1, 4
  %s16 = int_to_ptr.hbm [resolvable:$true] %s15
  %18 = dma.hbm_to_smem %s16, 16, [#allocation4], [#allocation2]
  %20 = dma.done [#allocation2], 32
  %21 = sfence
  $region1: #{tpu_custom_call.1} parent=0
    #allocation5 [shape = 'u8[65536]{0}', space=vmem, size = 0x10000, scoped, tag = 'input window, operand 2']
    #allocation6 [shape = 's32[2]{0}', space=sflag, size = 0x8, scoped, tag = 'scoped memory for tpu_custom_call.1']
    #allocation7 [shape = 's32[2]{0}', space=sflag, size = 0x8, scoped, tag = 'scoped memory for tpu_custom_call.1']
    #allocation8 [shape = 'u8[65536]{0}', space=vmem, size = 0x10000, scoped, tag = 'input window, operand 3']
    #allocation9 [shape = 's32[2]{0}', space=sflag, size = 0x8, scoped, tag = 'scoped memory for tpu_custom_call.1']
    #allocation10 [shape = 'u8[131072]{0}', space=vmem, size = 0x20000, scoped, tag = 'output window, operand 0']
    %22 = vsyncpa [#allocation6], 0
    %s23 = scalar_lea.sflag [#allocation6], 1
    %24 = vsyncpa %s23, 0
    %25 = vsyncpa [#allocation9], 0
    %s26 = scalar_lea.sflag [#allocation9], 1
    %27 = vsyncpa %s26, 0
    %28 = vsyncpa [#allocation7], 0
    %s29 = scalar_lea.sflag [#allocation7], 1
    %30 = vsyncpa %s29, 0
    loop: start=0, step=1, limit=6
    $region2: #{tpu_custom_call.1} parent=1 // loop_pre_header
      _
    $region3: #{tpu_custom_call.1} parent=1 // loop_header
      %s32 = sphi 0, %s36
      %p33 = scmp.ge.s32.totalorder %s32, 6
      %s39 = sphi 0, %s51
      %s40 = sphi 0, %s47
      %s41 = sphi 0, %s39
      %s42 = sphi 0, %s40
      %s43 = sphi 0, %s41
      %s44 = sphi 0, %s42
      %s62 = sphi 0, %s64
      %s65 = sphi 0, %s62
      %s66 = sphi 0, %s65
      %s82 = sphi 0, %s66
      %s94 = sphi 0, %s96
      %s97 = sphi 0, %s94
      %s98 = sphi 0, %s97
      %s114 = sphi 0, %s98
      %s120 = sphi 0, %s122
      %s123 = sphi 0, %s120
      %s124 = sphi 0, %s123
      %s140 = sphi 0, %s124
    $region4: #{tpu_custom_call.1} parent=1 // loop_header_branch
      %35 = sbr.rel (%p33) target = $region8
    $region5: #{tpu_custom_call.1} parent=1 // loop_body
      %s37 = ssub.s32 %s32, 1
      %s38 = ssub.s32 %s32, 2
      %s45 = sadd.s32 1, %s40
      %p46 = scmp.ge.s32.totalorder %s45, 2
      %s47 = scalar_select %p46, 0, %s45
      %s48 = sadd.s32 1, %s39
      %s49 = scalar_select %p46, %s48, %s39
      %p50 = scmp.ge.s32.totalorder %s49, 2
      %s51 = scalar_select %p50, 0, %s49
      %s52 = smul.u32 %s39, 2
      %s53 = sadd.s32 %s52, %s40
      %s54 = sld [smem:[#allocation4 + %s53]]
      %s55 = smul.u32 %s51, 2
      %s56 = sadd.s32 %s55, %s47
      %s57 = sld [smem:[#allocation4 + %s56]]
      %s58 = ssub.s32 %s39, %s51
      %s59 = ssub.s32 %s54, %s57
      %s60 = sor.u32 %s58, %s59
      %p61 = scmp.eq.s32.totalorder %s60, 0
      %s63 = sadd.s32 %s62, 1
      %s64 = scalar_select %p61, %s62, %s63
      %p67 = pneg %p61
      %p68 = scmp.eq.s32.totalorder %s32, 3
      %p69 = por %p67, %p68
      %p70 = scmp.ne.s32.totalorder %s62, %s65
      %p71 = scmp.eq.s32.totalorder %s32, 0
      %p72 = por %p70, %p71
      %p73 = scmp.ne.s32.totalorder %s62, %s65
      %p74 = scmp.eq.s32.totalorder %s37, 3
      %p75 = por %p73, %p74
      %p76 = scmp.ne.s32.totalorder %s65, %s66
      %p77 = scmp.eq.s32.totalorder %s37, 0
      %p78 = por %p76, %p77
      %p79 = scmp.ne.s32.totalorder %s65, %s66
      %p80 = scmp.eq.s32.totalorder %s38, 3
      %p81 = por %p79, %p80
      %p83 = scmp.ne.s32.totalorder %s66, %s82
      %p84 = scmp.eq.s32.totalorder %s38, 0
      %p85 = por %p83, %p84
      %s86 = smul.u32 %s39, 2
      %s87 = sadd.s32 %s86, %s40
      %s88 = sld [smem:[#allocation4 + %s87]]
      %s89 = smul.u32 %s51, 2
      %s90 = sadd.s32 %s89, %s47
      %s91 = sld [smem:[#allocation4 + %s90]]
      %s92 = ssub.s32 %s88, %s91
      %p93 = scmp.eq.s32.totalorder %s92, 0
      %s95 = sadd.s32 %s94, 1
      %s96 = scalar_select %p93, %s94, %s95
      %p99 = pneg %p93
      %p100 = scmp.eq.s32.totalorder %s32, 3
      %p101 = por %p99, %p100
      %p102 = scmp.ne.s32.totalorder %s94, %s97
      %p103 = scmp.eq.s32.totalorder %s32, 0
      %p104 = por %p102, %p103
      %p105 = scmp.ne.s32.totalorder %s94, %s97
      %p106 = scmp.eq.s32.totalorder %s37, 3
      %p107 = por %p105, %p106
      %p108 = scmp.ne.s32.totalorder %s97, %s98
      %p109 = scmp.eq.s32.totalorder %s37, 0
      %p110 = por %p108, %p109
      %p111 = scmp.ne.s32.totalorder %s97, %s98
      %p112 = scmp.eq.s32.totalorder %s38, 3
      %p113 = por %p111, %p112
      %p115 = scmp.ne.s32.totalorder %s98, %s114
      %p116 = scmp.eq.s32.totalorder %s38, 0
      %p117 = por %p115, %p116
      %s118 = ssub.s32 %s39, %s51
      %p119 = scmp.eq.s32.totalorder %s118, 0
      %s121 = sadd.s32 %s120, 1
      %s122 = scalar_select %p119, %s120, %s121
      %p125 = pneg %p119
      %p126 = scmp.eq.s32.totalorder %s32, 3
      %p127 = por %p125, %p126
      %p128 = scmp.ne.s32.totalorder %s120, %s123
      %p129 = scmp.eq.s32.totalorder %s32, 0
      %p130 = por %p128, %p129
      %p131 = scmp.ne.s32.totalorder %s120, %s123
      %p132 = scmp.eq.s32.totalorder %s37, 3
      %p133 = por %p131, %p132
      %p134 = scmp.ne.s32.totalorder %s123, %s124
      %p135 = scmp.eq.s32.totalorder %s37, 0
      %p136 = por %p134, %p135
      %p137 = scmp.ne.s32.totalorder %s123, %s124
      %p138 = scmp.eq.s32.totalorder %s38, 3
      %p139 = por %p137, %p138
      %p141 = scmp.ne.s32.totalorder %s124, %s140
      %p142 = scmp.eq.s32.totalorder %s38, 0
      %p143 = por %p141, %p142
      %p144 = scmp.le.s32.totalorder 1, %s32
      %p145 = scmp.lt.s32.totalorder %s32, 5
      %p146 = pnand %p144, %p145
      %p147 = pneg %p146
      // Predicated region
      $region9: #{tpu_custom_call.1} parent=5 // pred_check
        _
      $region10: #{tpu_custom_call.1} parent=5 // pred_check_branch
        %149 = sbr.rel (%p146) target = $region12
      $region11: #{tpu_custom_call.1} parent=5 // pred_region
        %s150 = ssub.s32 %s32, 1
      $region12: #{tpu_custom_call.1} parent=5 // pred_fallthru
        _
      %p151 = scmp.lt.s32.totalorder %s32, 4
      // Predicated region
      $region13: #{tpu_custom_call.1} parent=5 // pred_check
        %p152 = pneg %p151
      $region14: #{tpu_custom_call.1} parent=5 // pred_check_branch
        %154 = sbr.rel (%p152) target = $region16
      $region15: #{tpu_custom_call.1} parent=5 // pred_region
        // Predicated region
        $region17: #{tpu_custom_call.1} parent=15 // pred_check
          %p155 = pneg %p72
        $region18: #{tpu_custom_call.1} parent=15 // pred_check_branch
          %157 = sbr.rel (%p155) target = $region20
        $region19: #{tpu_custom_call.1} parent=15 // pred_region
          %s158 = sand.u32 %s62, 1
          %s159 = scalar_lea.sflag [#allocation6], %s158
          %s160 = sand.u32 %s62, 1
          %s161 = smul.addr %s160, 64
          %s162 = scalar_lea.vmem [#allocation5], %s161
          %s163 = smul.u32 %s39, 2
          %s164 = sadd.s32 %s163, %s40
          %s165 = sld [smem:[#allocation4 + %s164]]
          %s166 = smul.u32 16, %s39
          %168 = vsyncadd %s159, 0
          %s169 = smul.addr %s166, 2
          %s170 = sadd.s32 %s165, %s169
          %s171 = smul.addr %s170, 4
          %s172 = scalar_lea.hbm %s2, %s171
          %s173 = sshll.u32 %s172, 4
          %s174 = int_to_ptr.hbm [resolvable:$true] %s173
          %s175 = sshll.u32 %s162, 4
          %s176 = int_to_ptr.vmem [resolvable:$true] %s175
          %181 = dma.hbm_to_vmem [thread:$0]  %s174, 1024, %s176, %s159, 128, 64, 4
        $region20: #{tpu_custom_call.1} parent=15 // pred_fallthru
          _
        // Predicated region
        $region21: #{tpu_custom_call.1} parent=15 // pred_check
          %p182 = pneg %p104
        $region22: #{tpu_custom_call.1} parent=15 // pred_check_branch
          %184 = sbr.rel (%p182) target = $region24
        $region23: #{tpu_custom_call.1} parent=15 // pred_region
          %s185 = sand.u32 %s94, 1
          %s186 = scalar_lea.sflag [#allocation9], %s185
          %s187 = sand.u32 %s94, 1
          %s188 = smul.addr %s187, 64
          %s189 = scalar_lea.vmem [#allocation8], %s188
          %s190 = smul.u32 %s39, 2
          %s191 = sadd.s32 %s190, %s40
          %s192 = sld [smem:[#allocation4 + %s191]]
          %s193 = smul.u32 16, %s192
          %195 = vsyncadd %s186, 0
          %s196 = smul.addr %s193, 4
          %s197 = scalar_lea.hbm %s3, %s196
          %s198 = sshll.u32 %s197, 4
          %s199 = int_to_ptr.hbm [resolvable:$true] %s198
          %s200 = sshll.u32 %s189, 4
          %s201 = int_to_ptr.vmem [resolvable:$true] %s200
          %206 = dma.hbm_to_vmem [thread:$0]  %s199, 1024, %s201, %s186, 64, 64, 4
        $region24: #{tpu_custom_call.1} parent=15 // pred_fallthru
          _
      $region16: #{tpu_custom_call.1} parent=5 // pred_fallthru
        _
      %p207 = scmp.le.s32.totalorder 1, %s32
      %p208 = scmp.lt.s32.totalorder %s32, 5
      %p209 = pnand %p207, %p208
      %p210 = pneg %p209
      // Predicated region
      $region25: #{tpu_custom_call.1} parent=5 // pred_check
        _
      $region26: #{tpu_custom_call.1} parent=5 // pred_check_branch
        %212 = sbr.rel (%p209) target = $region28
      $region27: #{tpu_custom_call.1} parent=5 // pred_region
        %s213 = ssub.s32 %s32, 1
        %s214 = sand.u32 %s65, 1
        %s215 = scalar_lea.sflag [#allocation6], %s214
        %s216 = sand.u32 %s65, 1
        %s217 = smul.addr %s216, 64
        %s218 = scalar_lea.vmem [#allocation5], %s217
        // Predicated region
        $region29: #{tpu_custom_call.1} parent=27 // pred_check
          %p219 = pneg %p78
        $region30: #{tpu_custom_call.1} parent=27 // pred_check_branch
          %221 = sbr.rel (%p219) target = $region32
        $region31: #{tpu_custom_call.1} parent=27 // pred_region
          %223 = dma.done %s215, 1024
        $region32: #{tpu_custom_call.1} parent=27 // pred_fallthru
          _
        %s224 = sand.u32 %s97, 1
        %s225 = scalar_lea.sflag [#allocation9], %s224
        %s226 = sand.u32 %s97, 1
        %s227 = smul.addr %s226, 64
        %s228 = scalar_lea.vmem [#allocation8], %s227
        // Predicated region
        $region33: #{tpu_custom_call.1} parent=27 // pred_check
          %p229 = pneg %p110
        $region34: #{tpu_custom_call.1} parent=27 // pred_check_branch
          %231 = sbr.rel (%p229) target = $region36
        $region35: #{tpu_custom_call.1} parent=27 // pred_region
          %233 = dma.done %s225, 1024
        $region36: #{tpu_custom_call.1} parent=27 // pred_fallthru
          _
        %s234 = sand.u32 %s65, 1
        %s235 = scalar_lea.sflag [#allocation6], %s234
        %s236 = sand.u32 %s65, 1
        %s237 = smul.addr %s236, 64
        %s238 = scalar_lea.vmem [#allocation5], %s237
        %p239 = pneg %p78
        %p240 = pneg %p75
        %s241 = sand.u32 %s97, 1
        %s242 = scalar_lea.sflag [#allocation9], %s241
        %s243 = sand.u32 %s97, 1
        %s244 = smul.addr %s243, 64
        %s245 = scalar_lea.vmem [#allocation8], %s244
        %p246 = pneg %p110
        %p247 = pneg %p107
        %p248 = pneg %p136
        %p249 = pneg %p133
        %s250 = sand.u32 %s123, 1
        %s251 = scalar_lea.sflag [#allocation7], %s250
        %s252 = sand.u32 %s123, 1
        %s253 = smul.addr %s252, 128
        %s254 = scalar_lea.vmem [#allocation10], %s253
        %s255 = smul.u32 %s41, 2
        %s256 = sadd.s32 %s255, %s42
        %s257 = sld [smem:[#allocation4 + %s256]]
        %s258 = smul.u32 16, %s41
        %s259 = smul.u32 %s41, 2
        %s260 = sadd.s32 %s259, %s42
        %s261 = sld [smem:[#allocation4 + %s260]]
        %s262 = smul.u32 16, %s261
        %s263 = smul.u32 16, %s41
        %p264 = scmp.eq.s32.totalorder %s42, 0
        // Predicated region
        $region37: #{tpu_custom_call.1} parent=27 // pred_check
          %p265 = pneg %p264
        $region38: #{tpu_custom_call.1} parent=27 // pred_check_branch
          %267 = sbr.rel (%p265) target = $region40
        $region39: #{tpu_custom_call.1} parent=27 // pred_region
          %268 = vst [vmem:[%s254] sm:$0xff] 0.0
          %269 = vst [vmem:[%s254 + $0x8] sm:$0xff] 0.0
          %270 = vst [vmem:[%s254 + $0x10] sm:$0xff] 0.0
          %271 = vst [vmem:[%s254 + $0x18] sm:$0xff] 0.0
          %272 = vst [vmem:[%s254 + $0x20] sm:$0xff] 0.0
          %273 = vst [vmem:[%s254 + $0x28] sm:$0xff] 0.0
          %274 = vst [vmem:[%s254 + $0x30] sm:$0xff] 0.0
          %275 = vst [vmem:[%s254 + $0x38] sm:$0xff] 0.0
          %276 = vst [vmem:[%s254 + $0x40] sm:$0xff] 0.0
          %277 = vst [vmem:[%s254 + $0x48] sm:$0xff] 0.0
          %278 = vst [vmem:[%s254 + $0x50] sm:$0xff] 0.0
          %279 = vst [vmem:[%s254 + $0x58] sm:$0xff] 0.0
          %280 = vst [vmem:[%s254 + $0x60] sm:$0xff] 0.0
          %281 = vst [vmem:[%s254 + $0x68] sm:$0xff] 0.0
          %282 = vst [vmem:[%s254 + $0x70] sm:$0xff] 0.0
          %283 = vst [vmem:[%s254 + $0x78] sm:$0xff] 0.0
        $region40: #{tpu_custom_call.1} parent=27 // pred_fallthru
          _
        %s284 = sld [smem:[#allocation3 + %s41]]
        %p285 = scmp.lt.s32.totalorder %s42, %s284
        // Predicated region
        $region41: #{tpu_custom_call.1} parent=27 // pred_check
          %p286 = pneg %p285
        $region42: #{tpu_custom_call.1} parent=27 // pred_check_branch
          %288 = sbr.rel (%p286) target = $region44
        $region43: #{tpu_custom_call.1} parent=27 // pred_region
          %v289 = vld [vmem:[%s254] sm:$0xff]
          %v290 = vld [vmem:[%s254 + $0x8] sm:$0xff]
          %v291 = vld [vmem:[%s254 + $0x10] sm:$0xff]
          %v292 = vld [vmem:[%s254 + $0x18] sm:$0xff]
          %v293 = vld [vmem:[%s254 + $0x20] sm:$0xff]
          %v294 = vld [vmem:[%s254 + $0x28] sm:$0xff]
          %v295 = vld [vmem:[%s254 + $0x30] sm:$0xff]
          %v296 = vld [vmem:[%s254 + $0x38] sm:$0xff]
          %v297 = vld [vmem:[%s254 + $0x40] sm:$0xff]
          %v298 = vld [vmem:[%s254 + $0x48] sm:$0xff]
          %v299 = vld [vmem:[%s254 + $0x50] sm:$0xff]
          %v300 = vld [vmem:[%s254 + $0x58] sm:$0xff]
          %v301 = vld [vmem:[%s254 + $0x60] sm:$0xff]
          %v302 = vld [vmem:[%s254 + $0x68] sm:$0xff]
          %v303 = vld [vmem:[%s254 + $0x70] sm:$0xff]
          %v304 = vld [vmem:[%s254 + $0x78] sm:$0xff]
          %v305 = vld [vmem:[%s218] sm:$0xf]
          %v306 = vld [vmem:[%s218 + $0x4] sm:$0xf]
          %v307 = vld [vmem:[%s218 + $0x8] sm:$0xf]
          %v308 = vld [vmem:[%s218 + $0xc] sm:$0xf]
          %v309 = vld [vmem:[%s218 + $0x10] sm:$0xf]
          %v310 = vld [vmem:[%s218 + $0x14] sm:$0xf]
          %v311 = vld [vmem:[%s218 + $0x18] sm:$0xf]
          %v312 = vld [vmem:[%s218 + $0x1c] sm:$0xf]
          %v313 = vld [vmem:[%s218 + $0x20] sm:$0xf]
          %v314 = vld [vmem:[%s218 + $0x24] sm:$0xf]
          %v315 = vld [vmem:[%s218 + $0x28] sm:$0xf]
          %v316 = vld [vmem:[%s218 + $0x2c] sm:$0xf]
          %v317 = vld [vmem:[%s218 + $0x30] sm:$0xf]
          %v318 = vld [vmem:[%s218 + $0x34] sm:$0xf]
          %v319 = vld [vmem:[%s218 + $0x38] sm:$0xf]
          %v320 = vld [vmem:[%s218 + $0x3c] sm:$0xf]
          %v321 = vld [vmem:[%s228] sm:$0xf]
          %v322 = vld [vmem:[%s228 + $0x4] sm:$0xf]
          %v323 = vld [vmem:[%s228 + $0x8] sm:$0xf]
          %v324 = vld [vmem:[%s228 + $0xc] sm:$0xf]
          %v325 = vld [vmem:[%s228 + $0x10] sm:$0xf]
          %v326 = vld [vmem:[%s228 + $0x14] sm:$0xf]
          %v327 = vld [vmem:[%s228 + $0x18] sm:$0xf]
          %v328 = vld [vmem:[%s228 + $0x1c] sm:$0xf]
          %v329 = vld [vmem:[%s228 + $0x20] sm:$0xf]
          %v330 = vld [vmem:[%s228 + $0x24] sm:$0xf]
          %v331 = vld [vmem:[%s228 + $0x28] sm:$0xf]
          %v332 = vld [vmem:[%s228 + $0x2c] sm:$0xf]
          %v333 = vld [vmem:[%s228 + $0x30] sm:$0xf]
          %v334 = vld [vmem:[%s228 + $0x34] sm:$0xf]
          %v335 = vld [vmem:[%s228 + $0x38] sm:$0xf]
          %v336 = vld [vmem:[%s228 + $0x3c] sm:$0xf]
          %v353 = vunpack.c.l.b16 %v305
          %v354 = vunpack.c.l.b16 %v306
          %v355 = vunpack.c.l.b16 %v307
          %v356 = vunpack.c.l.b16 %v308
          %v357 = vunpack.c.l.b16 %v309
          %v358 = vunpack.c.l.b16 %v310
          %v359 = vunpack.c.l.b16 %v311
          %v360 = vunpack.c.l.b16 %v312
          %v361 = vunpack.c.l.b16 %v313
          %v362 = vunpack.c.l.b16 %v314
          %v363 = vunpack.c.l.b16 %v315
          %v364 = vunpack.c.l.b16 %v316
          %v365 = vunpack.c.l.b16 %v317
          %v366 = vunpack.c.l.b16 %v318
          %v367 = vunpack.c.l.b16 %v319
          %v368 = vunpack.c.l.b16 %v320
          %v369 = vpack.c.b16 %v354, %v353
          %v370 = vpack.c.b16 %v356, %v355
          %v371 = vpack.c.b16 %v358, %v357
          %v372 = vpack.c.b16 %v360, %v359
          %v373 = vpack.c.b16 %v362, %v361
          %v374 = vpack.c.b16 %v364, %v363
          %v375 = vpack.c.b16 %v366, %v365
          %v376 = vpack.c.b16 %v368, %v367
          %v401 = vunpack.c.l.b16 %v321
          %v402 = vunpack.c.l.b16 %v322
          %v403 = vunpack.c.l.b16 %v323
          %v404 = vunpack.c.l.b16 %v324
          %v405 = vunpack.c.l.b16 %v325
          %v406 = vunpack.c.l.b16 %v326
          %v407 = vunpack.c.l.b16 %v327
          %v408 = vunpack.c.l.b16 %v328
          %v409 = vunpack.c.l.b16 %v329
          %v410 = vunpack.c.l.b16 %v330
          %v411 = vunpack.c.l.b16 %v331
          %v412 = vunpack.c.l.b16 %v332
          %v413 = vunpack.c.l.b16 %v333
          %v414 = vunpack.c.l.b16 %v334
          %v415 = vunpack.c.l.b16 %v335
          %v416 = vunpack.c.l.b16 %v336
          %v417 = vpack.c.b16 %v402, %v401
          %v418 = vpack.c.b16 %v404, %v403
          %v419 = vpack.c.b16 %v406, %v405
          %v420 = vpack.c.b16 %v408, %v407
          %v421 = vpack.c.b16 %v410, %v409
          %v422 = vpack.c.b16 %v412, %v411
          %v423 = vpack.c.b16 %v414, %v413
          %v424 = vpack.c.b16 %v416, %v415
          %433 = vmatpush.bf16.msra.mxu0 %v424
          %434 = vmatpush.bf16.msra.mxu0 %v423
          %435 = vmatpush.bf16.msra.mxu0 %v422
          %436 = vmatpush.bf16.msra.mxu0 %v421
          %437 = vmatpush.bf16.msra.mxu0 %v420
          %438 = vmatpush.bf16.msra.mxu0 %v419
          %439 = vmatpush.bf16.msra.mxu0 %v418
          %440 = vmatpush.bf16.msra.mxu0 %v417
          %441 = vmatmul.bf16.gmra.mxu0 %v369
          %v442 = vpop.f32.mrf.mxu0
          %v443 = vadd.f32 0.0, %v442
          %v444 = vpop.f32.mrf.mxu0
          %v445 = vadd.f32 0.0, %v444
          %446 = vmatmul.bf16.gmra.mxu0 %v370
          %v447 = vpop.f32.mrf.mxu0
          %v448 = vadd.f32 0.0, %v447
          %v449 = vpop.f32.mrf.mxu0
          %v450 = vadd.f32 0.0, %v449
          %451 = vmatmul.bf16.gmra.mxu0 %v371
          %v452 = vpop.f32.mrf.mxu0
          %v453 = vadd.f32 0.0, %v452
          %v454 = vpop.f32.mrf.mxu0
          %v455 = vadd.f32 0.0, %v454
          %456 = vmatmul.bf16.gmra.mxu0 %v372
          %v457 = vpop.f32.mrf.mxu0
          %v458 = vadd.f32 0.0, %v457
          %v459 = vpop.f32.mrf.mxu0
          %v460 = vadd.f32 0.0, %v459
          %461 = vmatmul.bf16.gmra.mxu0 %v373
          %v462 = vpop.f32.mrf.mxu0
          %v463 = vadd.f32 0.0, %v462
          %v464 = vpop.f32.mrf.mxu0
          %v465 = vadd.f32 0.0, %v464
          %466 = vmatmul.bf16.gmra.mxu0 %v374
          %v467 = vpop.f32.mrf.mxu0
          %v468 = vadd.f32 0.0, %v467
          %v469 = vpop.f32.mrf.mxu0
          %v470 = vadd.f32 0.0, %v469
          %471 = vmatmul.bf16.gmra.mxu0 %v375
          %v472 = vpop.f32.mrf.mxu0
          %v473 = vadd.f32 0.0, %v472
          %v474 = vpop.f32.mrf.mxu0
          %v475 = vadd.f32 0.0, %v474
          %476 = vmatmul.bf16.gmra.mxu0 %v376
          %v477 = vpop.f32.mrf.mxu0
          %v478 = vadd.f32 0.0, %v477
          %v479 = vpop.f32.mrf.mxu0
          %v480 = vadd.f32 0.0, %v479
          %481 = vdwg.mxu0
          %v482 = vadd.f32 %v289, %v443
          %v483 = vadd.f32 %v290, %v445
          %v484 = vadd.f32 %v291, %v448
          %v485 = vadd.f32 %v292, %v450
          %v486 = vadd.f32 %v293, %v453
          %v487 = vadd.f32 %v294, %v455
          %v488 = vadd.f32 %v295, %v458
          %v489 = vadd.f32 %v296, %v460
          %v490 = vadd.f32 %v297, %v463
          %v491 = vadd.f32 %v298, %v465
          %v492 = vadd.f32 %v299, %v468
          %v493 = vadd.f32 %v300, %v470
          %v494 = vadd.f32 %v301, %v473
          %v495 = vadd.f32 %v302, %v475
          %v496 = vadd.f32 %v303, %v478
          %v497 = vadd.f32 %v304, %v480
          %498 = vst [vmem:[%s254] sm:$0xff] %v482
          %499 = vst [vmem:[%s254 + $0x8] sm:$0xff] %v483
          %500 = vst [vmem:[%s254 + $0x10] sm:$0xff] %v484
          %501 = vst [vmem:[%s254 + $0x18] sm:$0xff] %v485
          %502 = vst [vmem:[%s254 + $0x20] sm:$0xff] %v486
          %503 = vst [vmem:[%s254 + $0x28] sm:$0xff] %v487
          %504 = vst [vmem:[%s254 + $0x30] sm:$0xff] %v488
          %505 = vst [vmem:[%s254 + $0x38] sm:$0xff] %v489
          %506 = vst [vmem:[%s254 + $0x40] sm:$0xff] %v490
          %507 = vst [vmem:[%s254 + $0x48] sm:$0xff] %v491
          %508 = vst [vmem:[%s254 + $0x50] sm:$0xff] %v492
          %509 = vst [vmem:[%s254 + $0x58] sm:$0xff] %v493
          %510 = vst [vmem:[%s254 + $0x60] sm:$0xff] %v494
          %511 = vst [vmem:[%s254 + $0x68] sm:$0xff] %v495
          %512 = vst [vmem:[%s254 + $0x70] sm:$0xff] %v496
          %513 = vst [vmem:[%s254 + $0x78] sm:$0xff] %v497
        $region44: #{tpu_custom_call.1} parent=27 // pred_fallthru
          _
        %s514 = sand.u32 %s123, 1
        %s515 = scalar_lea.sflag [#allocation7], %s514
        %s516 = sand.u32 %s123, 1
        %s517 = smul.addr %s516, 128
        %s518 = scalar_lea.vmem [#allocation10], %s517
        // Predicated region
        $region45: #{tpu_custom_call.1} parent=27 // pred_check
          %p519 = pneg %p133
        $region46: #{tpu_custom_call.1} parent=27 // pred_check_branch
          %521 = sbr.rel (%p519) target = $region48
        $region47: #{tpu_custom_call.1} parent=27 // pred_region
          %s522 = smul.u32 16, %s41
          %524 = vsyncadd %s515, 0
          %s525 = smul.addr %s522, 8
          %s526 = scalar_lea.hbm %s4, %s525
          %s527 = sshll.u32 %s518, 4
          %s528 = int_to_ptr.vmem [resolvable:$true] %s527
          %s529 = sshll.u32 %s526, 4
          %s530 = int_to_ptr.hbm [resolvable:$true] %s529
          %535 = dma.vmem_to_hbm [thread:$0]  %s528, 2048, %s530, %s515, 128, 128, 8
        $region48: #{tpu_custom_call.1} parent=27 // pred_fallthru
          _
      $region28: #{tpu_custom_call.1} parent=5 // pred_fallthru
        _
      %p536 = scmp.le.s32.totalorder 2, %s32
      // Predicated region
      $region49: #{tpu_custom_call.1} parent=5 // pred_check
        %p537 = pneg %p536
      $region50: #{tpu_custom_call.1} parent=5 // pred_check_branch
        %539 = sbr.rel (%p537) target = $region52
      $region51: #{tpu_custom_call.1} parent=5 // pred_region
        %s540 = ssub.s32 %s32, 2
        // Predicated region
        $region53: #{tpu_custom_call.1} parent=51 // pred_check
          %p541 = pneg %p139
        $region54: #{tpu_custom_call.1} parent=51 // pred_check_branch
          %543 = sbr.rel (%p541) target = $region56
        $region55: #{tpu_custom_call.1} parent=51 // pred_region
          %s544 = sand.u32 %s124, 1
          %s545 = scalar_lea.sflag [#allocation7], %s544
          %s546 = sand.u32 %s124, 1
          %s547 = smul.addr %s546, 128
          %s548 = scalar_lea.vmem [#allocation10], %s547
          %550 = dma.done %s545, 2048
        $region56: #{tpu_custom_call.1} parent=51 // pred_fallthru
          _
      $region52: #{tpu_custom_call.1} parent=5 // pred_fallthru
        _
    $region6: #{tpu_custom_call.1} parent=1 // loop_footer
      %s36 = sadd.s32 1, %s32
    $region7: #{tpu_custom_call.1} parent=1 // loop_footer_branch
      %31 = sbr.rel target = $region3
    $region8: #{tpu_custom_call.1} parent=1 // loop_exit
      _
    %551 = vsyncpa [#allocation6], 1
    %s552 = scalar_lea.sflag [#allocation6], 1
    %553 = vsyncpa %s552, 1
    %554 = vsyncpa [#allocation9], 1
    %s555 = scalar_lea.sflag [#allocation9], 1
    %556 = vsyncpa %s555, 1
    %557 = vsyncpa [#allocation7], 1
    %s558 = scalar_lea.sflag [#allocation7], 1
    %559 = vsyncpa %s558, 1

</llo_original>
